<compile_context>
chip_gen: v6e
topology: v6e:2x2x1
jax: 0.10.0
libtpu: 0.0.40
codegen_flags: <defaults>
</compile_context>

<pallas_src>
import functools
import math

import jax
import jax.numpy as jnp
from jax.experimental import pallas as pl
from jax.experimental.pallas import tpu as pltpu


_TM_MAX = 512
_TN_MAX = 512
_TK_MAX = 1024
_LANE = 128


def _round_up(x, m):
    return ((x + m - 1) // m) * m


def _sublane_granule(dtype):
    # Min sublane tile: 8 for 4-byte, 16 for 2-byte, 32 for 1-byte dtypes.
    return {4: 8, 2: 16, 1: 32}.get(jnp.dtype(dtype).itemsize, 8)


def _choose_tile(dim, max_tile, granule):
    """Padding-aware tile clamp.

    Split `dim` into the fewest blocks of size <= max_tile, then round the
    block size up to the hardware granule; padding waste is bounded by one
    granule per block (instead of up to max_tile-1 rows/cols).
    """
    dim = max(int(dim), 1)
    n_blocks = -(-dim // max_tile)
    return _round_up(-(-dim // n_blocks), granule)


def _linear_leakyrelu_kernel_f32(x_ref, w_ref, b_ref, o_ref, *, negative_slope):
    """f32 path: accumulate straight into the VMEM-resident output tile."""
    k = pl.program_id(2)

    @pl.when(k == 0)
    def _init():
        o_ref[...] = jnp.zeros_like(o_ref)

    # x tile [tm, tk] @ w tile [tk, tn] -> [tm, tn] on the MXU (f32 acc).
    o_ref[...] += jnp.dot(x_ref[...], w_ref[...],
                          preferred_element_type=jnp.float32)

    @pl.when(k == pl.num_programs(2) - 1)
    def _finalize():
        y = o_ref[...] + b_ref[...]          # (1, tn) bias broadcasts over rows
        o_ref[...] = jnp.where(y > 0, y, negative_slope * y)


def _linear_leakyrelu_kernel_acc(x_ref, w_ref, b_ref, o_ref, acc_ref, *,
                                 negative_slope):
    """Low-precision output path: f32 scratch accumulator, cast on finalize."""
    k = pl.program_id(2)

    @pl.when(k == 0)
    def _init():
        acc_ref[...] = jnp.zeros_like(acc_ref)

    acc_ref[...] += jnp.dot(x_ref[...], w_ref[...],
                            preferred_element_type=jnp.float32)

    @pl.when(k == pl.num_programs(2) - 1)
    def _finalize():
        y = acc_ref[...] + b_ref[...]
        o_ref[...] = jnp.where(y > 0, y, negative_slope * y).astype(o_ref.dtype)


class LinearReLU:
    """Pallas TPU port of `nn.Linear(in, out, bias) + nn.LeakyReLU()`.

    weight: [out_feats, in_feats] (PyTorch layout); transposed/padded once here.
    bias:   [out_feats] or None.
    """

    def __init__(self, weight, bias=None, *, negative_slope=0.01,
                 tn=None, tk=None):
        weight = jnp.asarray(weight)
        N, K = weight.shape
        self.out_features = N
        self.in_features = K
        self.negative_slope = float(negative_slope)
        self.dtype = weight.dtype

        self.tn = int(tn) if tn else _choose_tile(N, _TN_MAX, _LANE)
        self.tk = int(tk) if tk else _choose_tile(K, _TK_MAX, _LANE)
        self.Np = _round_up(N, self.tn)
        self.Kp = _round_up(K, self.tk)

        # One-time weight layout: [out, in] -> [in, out], zero-padded.
        w_t = weight.T
        if (self.Kp, self.Np) != (K, N):
            w_t = jnp.pad(w_t, ((0, self.Kp - K), (0, self.Np - N)))
        self.w_t = w_t                                          # [Kp, Np]

        b = (jnp.zeros((N,), jnp.float32) if bias is None
             else jnp.asarray(bias, jnp.float32))
        if self.Np != N:
            b = jnp.pad(b, (0, self.Np - N))
        self.b = b.reshape(1, self.Np)                          # f32 bias row

    def __call__(self, x):
        assert x.ndim == 2 and x.shape[1] == self.in_features, \
            "x must be [batch, in_feats]"
        x = x.astype(self.dtype)
        B = x.shape[0]
        K, N = self.in_features, self.out_features
        Kp, Np = self.Kp, self.Np

        sub = _sublane_granule(x.dtype)
        tm = _choose_tile(B, _TM_MAX, sub)
        Mp = _round_up(B, tm)

        tn, tk = self.tn, self.tk
        # Megacore (v7x): keep >= 2 blocks along the parallel axes when we can.
        # Np is a multiple of tn, so halving tn keeps it an exact divisor.
        if (Mp // tm) * (Np // tn) < 2 and tn >= 256 and (tn // 2) % _LANE == 0:
            tn //= 2

        # Only the (small) activation may need per-call padding.
        if Mp != B or Kp != K:
            x_p = jnp.pad(x, ((0, Mp - B), (0, Kp - K)))
        else:
            x_p = x

        grid = (Mp // tm, Np // tn, Kp // tk)
        out_dtype = x.dtype
        use_acc = out_dtype != jnp.float32

        in_bytes = jnp.dtype(x.dtype).itemsize
        out_bytes = jnp.dtype(out_dtype).itemsize
        # Double-buffered input/output tiles (+ f32 scratch if used) + headroom,
        # capped at 48 MiB so v7x (64 MiB/TC) keeps room for Mosaic scratch.
        vmem_need = (2 * (tm * tk + tk * tn) * in_bytes
                     + 2 * tn * 4
                     + 2 * tm * tn * out_bytes
                     + (tm * tn * 4 if use_acc else 0))
        vmem_limit = int(min(48 * 2**20,
                             max(int(vmem_need * 1.5) + (2 << 20), 16 << 20)))

        cost = pl.CostEstimate(
            flops=2 * Mp * Np * Kp,
            bytes_accessed=in_bytes * (Mp * Kp + Kp * Np) + out_bytes * Mp * Np,
            transcendentals=0,
        )

        if use_acc:
            kernel = functools.partial(_linear_leakyrelu_kernel_acc,
                                       negative_slope=self.negative_slope)
            scratch = [pltpu.VMEM((tm, tn), jnp.float32)]
        else:
            kernel = functools.partial(_linear_leakyrelu_kernel_f32,
                                       negative_slope=self.negative_slope)
            scratch = []

        out_p = pl.pallas_call(
            kernel,
            out_shape=jax.ShapeDtypeStruct((Mp, Np), out_dtype),
            grid_spec=pltpu.PrefetchScalarGridSpec(
                num_scalar_prefetch=0,
                grid=grid,
                in_specs=[
                    pl.BlockSpec((tm, tk), lambda i, j, k: (i, k)),   # x   [Mp, Kp]
                    pl.BlockSpec((tk, tn), lambda i, j, k: (k, j)),   # w^T [Kp, Np]
                    pl.BlockSpec((1, tn), lambda i, j, k: (0, j)),    # bias row
                ],
                out_specs=pl.BlockSpec((tm, tn), lambda i, j, k: (i, j)),
                scratch_shapes=scratch,
            ),
            compiler_params=pltpu.CompilerParams(
                dimension_semantics=("parallel", "parallel", "arbitrary"),
                vmem_limit_bytes=vmem_limit,
            ),
            cost_estimate=cost,
        )(x_p, self.w_t, self.b)

        if Mp == B and Np == N:
            return out_p
        return out_p[:B, :N]


def init_params(key, in_feats, out_feats):
    # Mirror PyTorch nn.Linear default init: U(-1/sqrt(in), 1/sqrt(in)).
    kw, kb = jax.random.split(key)
    bound = 1.0 / math.sqrt(in_feats)
    weight = jax.random.uniform(kw, (out_feats, in_feats), jnp.float32, -bound, bound)
    bias = jax.random.uniform(kb, (out_feats,), jnp.float32, -bound, bound)
    return weight, bias


if __name__ == "__main__":
    key = jax.random.PRNGKey(0)
    kx, kp = jax.random.split(key)

    # Small, non-square shapes (exercise padding + the pre-transposed weight path).
    batch, in_feats, out_feats = 8, 48, 40
    x = jax.random.normal(kx, (batch, in_feats), dtype=jnp.float32)
    weight, bias = init_params(kp, in_feats, out_feats)

    mod = LinearReLU(weight, bias)      # one-time weight transpose + pad
    out = mod(x)
    jax.block_until_ready(out)

    # Plain-JAX reference (PyTorch semantics): LeakyReLU(x @ W^T + b), slope 0.01.
    ref = x @ weight.T + bias
    ref = jnp.where(ref > 0, ref, 0.01 * ref)
    assert out.shape == ref.shape, "shape mismatch vs reference"
    assert jnp.allclose(out, ref, atol=1e-5, rtol=1e-5), "mismatch vs reference"

    print("KERNEL_OK")
</pallas_src>

<mosaic_0001>
module attributes {stable_mosaic.version = 11 : i64} {
  func.func @_linear_leakyrelu_kernel_f32(%arg0: i32, %arg1: i32, %arg2: i32, %arg3: memref<8x128xf32, #tpu.memory_space<vmem>>, %arg4: memref<128x128xf32, #tpu.memory_space<vmem>>, %arg5: memref<1x128xf32, #tpu.memory_space<vmem>>, %arg6: memref<8x128xf32, #tpu.memory_space<vmem>>) attributes {dimension_semantics = [#tpu.dimension_semantics<parallel>, #tpu.dimension_semantics<parallel>, #tpu.dimension_semantics<arbitrary>], iteration_bounds = array<i64: 1, 1, 1>, scalar_prefetch = 0 : i64, scratch_operands = 0 : i64, tpu.core_type = #tpu.core_type<tc>, window_params = [{transform_indices = @transform_0, window_bounds = array<i64: 8, 128>}, {transform_indices = @transform_1, window_bounds = array<i64: 128, 128>}, {transform_indices = @transform_2, window_bounds = array<i64: 1, 128>}, {transform_indices = @transform_3, window_bounds = array<i64: 8, 128>}]} {
    %c0_i32 = arith.constant 0 : i32
    %0 = arith.cmpi eq, %arg2, %c0_i32 : i32
    %1 = arith.extui %0 : i1 to i32
    %c0_i32_0 = arith.constant 0 : i32
    %2 = arith.cmpi ne, %1, %c0_i32_0 : i32
    scf.if %2 {
      %cst_10 = arith.constant 0.000000e+00 : f32
      %12 = vector.broadcast %cst_10 : f32 to vector<8x128xf32>
      %c0_11 = arith.constant 0 : index
      %c0_12 = arith.constant 0 : index
      %13 = vector.load %arg6[%c0_11, %c0_12] : memref<8x128xf32, #tpu.memory_space<vmem>>, vector<8x128xf32>
      tpu.vector_store %arg6[%c0_11, %c0_12], %12 {strides = array<i32>} : memref<8x128xf32, #tpu.memory_space<vmem>>, vector<8x128xf32>,
    } else {
    }
    %c0 = arith.constant 0 : index
    %c0_1 = arith.constant 0 : index
    %3 = vector.load %arg6[%c0, %c0_1] : memref<8x128xf32, #tpu.memory_space<vmem>>, vector<8x128xf32>
    %c0_2 = arith.constant 0 : index
    %c0_3 = arith.constant 0 : index
    %4 = vector.load %arg3[%c0_2, %c0_3] : memref<8x128xf32, #tpu.memory_space<vmem>>, vector<8x128xf32>
    %c0_4 = arith.constant 0 : index
    %c0_5 = arith.constant 0 : index
    %5 = vector.load %arg4[%c0_4, %c0_5] : memref<128x128xf32, #tpu.memory_space<vmem>>, vector<128x128xf32>
    %cst = arith.constant dense<0.000000e+00> : vector<8x128xf32>
    %6 = tpu.matmul %4, %5, %cst {dimension_numbers = #tpu.dot_dimension_numbers<[1], [0], [0], [1], [0, 0, 1, 1], [], []>} : vector<8x128xf32>, vector<128x128xf32>, vector<8x128xf32> -> vector<8x128xf32>
    %7 = arith.addf %3, %6 : vector<8x128xf32>
    %c0_6 = arith.constant 0 : index
    %c0_7 = arith.constant 0 : index
    %8 = vector.load %arg6[%c0_6, %c0_7] : memref<8x128xf32, #tpu.memory_space<vmem>>, vector<8x128xf32>
    tpu.vector_store %arg6[%c0_6, %c0_7], %7 {strides = array<i32>} : memref<8x128xf32, #tpu.memory_space<vmem>>, vector<8x128xf32>,
    %c0_i32_8 = arith.constant 0 : i32
    %9 = arith.cmpi eq, %arg2, %c0_i32_8 : i32
    %10 = arith.extui %9 : i1 to i32
    %c0_i32_9 = arith.constant 0 : i32
    %11 = arith.cmpi ne, %10, %c0_i32_9 : i32
    scf.if %11 {
      %c0_10 = arith.constant 0 : index
      %c0_11 = arith.constant 0 : index
      %12 = vector.load %arg6[%c0_10, %c0_11] : memref<8x128xf32, #tpu.memory_space<vmem>>, vector<8x128xf32>
      %c0_12 = arith.constant 0 : index
      %c0_13 = arith.constant 0 : index
      %13 = vector.load %arg5[%c0_12, %c0_13] : memref<1x128xf32, #tpu.memory_space<vmem>>, vector<1x128xf32>
      %14 = vector.broadcast %13 : vector<1x128xf32> to vector<8x128xf32>
      %15 = arith.addf %12, %14 : vector<8x128xf32>
      %cst_14 = arith.constant 0.000000e+00 : f32
      %16 = vector.broadcast %cst_14 : f32 to vector<8x128xf32>
      %17 = arith.cmpf ogt, %15, %16 : vector<8x128xf32>
      %cst_15 = arith.constant 0.00999999977 : f32
      %18 = vector.broadcast %cst_15 : f32 to vector<8x128xf32>
      %19 = arith.mulf %18, %15 : vector<8x128xf32>
      %20 = arith.select %17, %15, %19 : vector<8x128xi1>, vector<8x128xf32>
      %c0_16 = arith.constant 0 : index
      %c0_17 = arith.constant 0 : index
      %21 = vector.load %arg6[%c0_16, %c0_17] : memref<8x128xf32, #tpu.memory_space<vmem>>, vector<8x128xf32>
      tpu.vector_store %arg6[%c0_16, %c0_17], %20 {strides = array<i32>} : memref<8x128xf32, #tpu.memory_space<vmem>>, vector<8x128xf32>,
    } else {
    }
    return
  }
  func.func @transform_0(%arg0: i32, %arg1: i32, %arg2: i32) -> (i32, i32) {
    %c0_i32 = arith.constant 0 : i32
    return %arg0, %arg2 : i32, i32
  }
  func.func @transform_1(%arg0: i32, %arg1: i32, %arg2: i32) -> (i32, i32) {
    %c0_i32 = arith.constant 0 : i32
    return %arg2, %arg1 : i32, i32
  }
  func.func @transform_2(%arg0: i32, %arg1: i32, %arg2: i32) -> (i32, i32) {
    %c0_i32 = arith.constant 0 : i32
    %c0_i32_0 = arith.constant 0 : i32
    return %c0_i32, %arg1 : i32, i32
  }
  func.func @transform_3(%arg0: i32, %arg1: i32, %arg2: i32) -> (i32, i32) {
    %c0_i32 = arith.constant 0 : i32
    return %arg0, %arg1 : i32, i32
  }
}

</mosaic_0001>

<llo_original>
// kernel: tpu_custom_call.1
$region0: #{tpu_custom_call.1}
  #allocation0 [shape = 'u32[]', space=smem, size = 0x4, offset = 0x4, fixed_abs, tag = 'smem constant byte address 0x4 - core index']
  #allocation1 [shape = 'u32[144,128]{1,0:T(1,128)}', space=vmem, size = 0x12000, scoped, tag = 'internal scratch']
  %s0 = inlined_call_operand.hbm [shape: f32[8,128], index: 0, kind: input, shape index: {}]
  %s1 = inlined_call_operand.hbm [shape: f32[128,128], index: 1, kind: input, shape index: {}]
  %s2 = inlined_call_operand.vmem [shape: f32[1,128], index: 2, kind: input, shape index: {}]
  %s3 = inlined_call_operand.hbm [shape: f32[8,128], index: 3, kind: output, shape index: {}]
  %s4 = sld [smem:[#allocation0]]
  $region38: #{tpu_custom_call.1} parent=0
    _
  %s6 = ssub.s32 1, %s4
  %s7 = scalar_select 0, %s6, %s4
  $region1: #{tpu_custom_call.1} parent=0
    #allocation2 [shape = 'u8[4096]{0}', space=vmem, size = 0x1000, scoped, tag = 'input window, operand 0, single buffered']
    #allocation3 [shape = 's32[1]{0}', space=sflag, size = 0x4, scoped, tag = 'scoped memory for tpu_custom_call.1']
    #allocation4 [shape = 's32[1]{0}', space=sflag, size = 0x4, scoped, tag = 'scoped memory for tpu_custom_call.1']
    #allocation5 [shape = 'u8[65536]{0}', space=vmem, size = 0x10000, scoped, tag = 'input window, operand 1, single buffered']
    #allocation6 [shape = 's32[1]{0}', space=sflag, size = 0x4, scoped, tag = 'scoped memory for tpu_custom_call.1']
    #allocation7 [shape = 'u8[4096]{0}', space=vmem, size = 0x1000, scoped, tag = 'output window, operand 0, single buffered']
    %8 = vsyncpa [#allocation3], 0
    %9 = vsyncpa [#allocation6], 0
    %10 = vsyncpa [#allocation4], 0
    // Predicated region
    $region2: #{tpu_custom_call.1} parent=1 // pred_check
      _
    $region3: #{tpu_custom_call.1} parent=1 // pred_check_branch
      %12 = sbr.rel (0) target = $region5
    $region4: #{tpu_custom_call.1} parent=1 // pred_region
      %s14 = ssub.s32 128, 128
      %15 = vsyncadd [#allocation3], %s14
      %s17 = sshll.u32 [#allocation2], 4
      %s18 = int_to_ptr.vmem [resolvable:$true] %s17
      %20 = dma.hbm_to_vmem [thread:$0]  %s0, 128, %s18, [#allocation3]
    $region5: #{tpu_custom_call.1} parent=1 // pred_fallthru
      _
    // Predicated region
    $region6: #{tpu_custom_call.1} parent=1 // pred_check
      _
    $region7: #{tpu_custom_call.1} parent=1 // pred_check_branch
      %22 = sbr.rel (0) target = $region9
    $region8: #{tpu_custom_call.1} parent=1 // pred_region
      %s24 = ssub.s32 2048, 2048
      %25 = vsyncadd [#allocation6], %s24
      %s26 = sshll.u32 [#allocation5], 4
      %s27 = int_to_ptr.vmem [resolvable:$true] %s26
      %32 = dma.hbm_to_vmem [thread:$0]  %s1, 2048, %s27, [#allocation6], 128, 128, 8
    $region9: #{tpu_custom_call.1} parent=1 // pred_fallthru
      _
    // Predicated region
    $region10: #{tpu_custom_call.1} parent=1 // pred_check
      _
    $region11: #{tpu_custom_call.1} parent=1 // pred_check_branch
      %34 = sbr.rel (0) target = $region13
    $region12: #{tpu_custom_call.1} parent=1 // pred_region
      _
    $region13: #{tpu_custom_call.1} parent=1 // pred_fallthru
      _
    // Predicated region
    $region14: #{tpu_custom_call.1} parent=1 // pred_check
      _
    $region15: #{tpu_custom_call.1} parent=1 // pred_check_branch
      %36 = sbr.rel (0) target = $region17
    $region16: #{tpu_custom_call.1} parent=1 // pred_region
      %37 = dma.done [#allocation3], 128
    $region17: #{tpu_custom_call.1} parent=1 // pred_fallthru
      _
    // Predicated region
    $region18: #{tpu_custom_call.1} parent=1 // pred_check
      _
    $region19: #{tpu_custom_call.1} parent=1 // pred_check_branch
      %39 = sbr.rel (0) target = $region21
    $region20: #{tpu_custom_call.1} parent=1 // pred_region
      %40 = dma.done [#allocation6], 2048
    $region21: #{tpu_custom_call.1} parent=1 // pred_fallthru
      _
    %p41 = scmp.eq.s32.totalorder 0, 0
    // Predicated region
    $region22: #{tpu_custom_call.1} parent=1 // pred_check
      %p42 = pneg %p41
    $region23: #{tpu_custom_call.1} parent=1 // pred_check_branch
      %44 = sbr.rel (%p42) target = $region25
    $region24: #{tpu_custom_call.1} parent=1 // pred_region
      %45 = vst [vmem:[#allocation7] sm:$0xff] 0.0
    $region25: #{tpu_custom_call.1} parent=1 // pred_fallthru
      _
    %v46 = vld [vmem:[#allocation7] sm:$0xff]
    %v47 = vld [vmem:[#allocation2] sm:$0xff]
    %v48 = vld [vmem:[#allocation5] sm:$0xff]
    %v49 = vld [vmem:[#allocation5 + $0x8] sm:$0xff]
    %v50 = vld [vmem:[#allocation5 + $0x10] sm:$0xff]
    %v51 = vld [vmem:[#allocation5 + $0x18] sm:$0xff]
    %v52 = vld [vmem:[#allocation5 + $0x20] sm:$0xff]
    %v53 = vld [vmem:[#allocation5 + $0x28] sm:$0xff]
    %v54 = vld [vmem:[#allocation5 + $0x30] sm:$0xff]
    %v55 = vld [vmem:[#allocation5 + $0x38] sm:$0xff]
    %v56 = vld [vmem:[#allocation5 + $0x40] sm:$0xff]
    %v57 = vld [vmem:[#allocation5 + $0x48] sm:$0xff]
    %v58 = vld [vmem:[#allocation5 + $0x50] sm:$0xff]
    %v59 = vld [vmem:[#allocation5 + $0x58] sm:$0xff]
    %v60 = vld [vmem:[#allocation5 + $0x60] sm:$0xff]
    %v61 = vld [vmem:[#allocation5 + $0x68] sm:$0xff]
    %v62 = vld [vmem:[#allocation5 + $0x70] sm:$0xff]
    %v63 = vld [vmem:[#allocation5 + $0x78] sm:$0xff]
    %64 = vmatprep.subr.mxu0 0.0
    %65 = vmatpush1.msra.mxu0 %v63
    %66 = vmatprep.subr.mxu0 0.0
    %67 = vmatpush1.msra.mxu0 %v62
    %68 = vmatprep.subr.mxu0 0.0
    %69 = vmatpush1.msra.mxu0 %v61
    %70 = vmatprep.subr.mxu0 0.0
    %71 = vmatpush1.msra.mxu0 %v60
    %72 = vmatprep.subr.mxu0 0.0
    %73 = vmatpush1.msra.mxu0 %v59
    %74 = vmatprep.subr.mxu0 0.0
    %75 = vmatpush1.msra.mxu0 %v58
    %76 = vmatprep.subr.mxu0 0.0
    %77 = vmatpush1.msra.mxu0 %v57
    %78 = vmatprep.subr.mxu0 0.0
    %79 = vmatpush1.msra.mxu0 %v56
    %80 = vmatprep.subr.mxu0 0.0
    %81 = vmatpush1.msra.mxu0 %v55
    %82 = vmatprep.subr.mxu0 0.0
    %83 = vmatpush1.msra.mxu0 %v54
    %84 = vmatprep.subr.mxu0 0.0
    %85 = vmatpush1.msra.mxu0 %v53
    %86 = vmatprep.subr.mxu0 0.0
    %87 = vmatpush1.msra.mxu0 %v52
    %88 = vmatprep.subr.mxu0 0.0
    %89 = vmatpush1.msra.mxu0 %v51
    %90 = vmatprep.subr.mxu0 0.0
    %91 = vmatpush1.msra.mxu0 %v50
    %92 = vmatprep.subr.mxu0 0.0
    %93 = vmatpush1.msra.mxu0 %v49
    %94 = vmatprep.subr.mxu0 0.0
    %95 = vmatpush1.msra.mxu0 %v48
    %96 = vmatprep.subr.mxu0 0.0
    %97 = vmatpush2.msra.mxu0 0.0
    %98 = vmatprep.subr.mxu0 0.0
    %99 = vmatpush2.msra.mxu0 0.0
    %100 = vmatprep.subr.mxu0 0.0
    %101 = vmatpush2.msra.mxu0 0.0
    %102 = vmatprep.subr.mxu0 0.0
    %103 = vmatpush2.msra.mxu0 0.0
    %104 = vmatprep.subr.mxu0 0.0
    %105 = vmatpush2.msra.mxu0 0.0
    %106 = vmatprep.subr.mxu0 0.0
    %107 = vmatpush2.msra.mxu0 0.0
    %108 = vmatprep.subr.mxu0 0.0
    %109 = vmatpush2.msra.mxu0 0.0
    %110 = vmatprep.subr.mxu0 0.0
    %111 = vmatpush2.msra.mxu0 0.0
    %112 = vmatprep.subr.mxu0 0.0
    %113 = vmatpush2.msra.mxu0 0.0
    %114 = vmatprep.subr.mxu0 0.0
    %115 = vmatpush2.msra.mxu0 0.0
    %116 = vmatprep.subr.mxu0 0.0
    %117 = vmatpush2.msra.mxu0 0.0
    %118 = vmatprep.subr.mxu0 0.0
    %119 = vmatpush2.msra.mxu0 0.0
    %120 = vmatprep.subr.mxu0 0.0
    %121 = vmatpush2.msra.mxu0 0.0
    %122 = vmatprep.subr.mxu0 0.0
    %123 = vmatpush2.msra.mxu0 0.0
    %124 = vmatprep.subr.mxu0 0.0
    %125 = vmatpush2.msra.mxu0 0.0
    %126 = vmatprep.subr.mxu0 0.0
    %127 = vmatpush2.msra.mxu0 0.0
    %128 = vmatprep.mubr.f32.mxu0 0.0
    %129 = vmatmul.mubr.f32.gmra.mxu0 %v47
    %v130 = vpop.f32.mrf.mxu0
    %v131 = vadd.f32 0.0, %v130
    %v132 = vpop.f32.mrf.mxu0
    %133 = vdwg.mxu0
    %v134 = vadd.f32 %v46, %v131
    %135 = vst [vmem:[#allocation7] sm:$0xff] %v134
    // Predicated region
    $region26: #{tpu_custom_call.1} parent=1 // pred_check
      %p136 = pneg %p41
    $region27: #{tpu_custom_call.1} parent=1 // pred_check_branch
      %138 = sbr.rel (%p136) target = $region29
    $region28: #{tpu_custom_call.1} parent=1 // pred_region
      %v139 = vld [vmem:[#allocation7] sm:$0xff]
      %v140 = vld [vmem:[%s2] sm:$0x1]
      %v142 = vlaneseq
      %v143 = vshrl.u32 %v142, 7
      %v144 = vsub.s32 0, %v143
      %v145 = vrot.slane %v140, %v144
      %v147 = vadd.f32 %v139, %v145
      %vm148 = vcmp.gt.f32.partialorder %v147, 0.0
      %v149 = vmul.f32 %v147, 0.01
      %v150 = vsel %vm148, %v147, %v149
      %151 = vst [vmem:[#allocation7] sm:$0xff] %v150
    $region29: #{tpu_custom_call.1} parent=1 // pred_fallthru
      _
    // Predicated region
    $region30: #{tpu_custom_call.1} parent=1 // pred_check
      _
    $region31: #{tpu_custom_call.1} parent=1 // pred_check_branch
      %153 = sbr.rel (0) target = $region33
    $region32: #{tpu_custom_call.1} parent=1 // pred_region
      %s155 = ssub.s32 128, 128
      %156 = vsyncadd [#allocation4], %s155
      %s158 = sshll.u32 [#allocation7], 4
      %s159 = int_to_ptr.vmem [resolvable:$true] %s158
      %161 = dma.vmem_to_hbm [thread:$0]  %s159, 128, %s3, [#allocation4]
    $region33: #{tpu_custom_call.1} parent=1 // pred_fallthru
      _
    // Predicated region
    $region34: #{tpu_custom_call.1} parent=1 // pred_check
      _
    $region35: #{tpu_custom_call.1} parent=1 // pred_check_branch
      %163 = sbr.rel (0) target = $region37
    $region36: #{tpu_custom_call.1} parent=1 // pred_region
      %164 = dma.done [#allocation4], 128
    $region37: #{tpu_custom_call.1} parent=1 // pred_fallthru
      _
    %165 = vsyncpa [#allocation3], 1
    %166 = vsyncpa [#allocation6], 1
    %167 = vsyncpa [#allocation4], 1

</llo_original>
